<compile_context>
chip_gen: v5e
topology: v5e:2x2
jax: 0.10.0
libtpu: 0.0.40
codegen_flags: <defaults>
</compile_context>

<pallas_src>
import jax
import jax.numpy as jnp
from jax.experimental import pallas as pl
from jax.experimental.pallas import tpu as pltpu


def _round_up(n: int, m: int) -> int:
    return ((n + m - 1) // m) * m


def dae_kernel(x_ref, w1_ref, b1_ref, w2_ref, b2_ref, o_ref):
    # Encoder: (TB, Fp) @ (Fp, Hp) + (1, Hp)  -- MXU, f32 accumulate.
    h = jnp.dot(x_ref[...], w1_ref[...], preferred_element_type=jnp.float32)
    h = h + b1_ref[...]
    # Dropout (eval mode) == identity.
    # Decoder: (TB, Hp) @ (Hp, Fp) + (1, Fp)  -- fused; h never touches HBM.
    y = jnp.dot(h.astype(w2_ref.dtype), w2_ref[...], preferred_element_type=jnp.float32)
    y = y + b2_ref[...]
    o_ref[...] = y.astype(o_ref.dtype)


def denoising_autoencoder(x_nchw, w1, b1, w2, b2, *, tb=None):
    """x_nchw: (B, C, H, W) float32.  w1: (F, hidden), b1: (hidden,),
    w2: (hidden, F), b2: (F,)  (weights stored transposed vs. PyTorch).
    Returns (B, F) float32."""
    B = x_nchw.shape[0]
    F = w1.shape[0]
    H = w1.shape[1]
    x_flat = x_nchw.reshape(B, F)          # nn.Flatten (row-major, same as torch)

    # Lane-align feature / hidden dims to 128 (unmasked stores, full MXU tiles).
    Fp = _round_up(F, 128)
    Hp = _round_up(H, 128)

    # Batch tile: one 128-row MXU tile when the batch is large enough; otherwise
    # just pad B to a sublane multiple and run a single tile (avoids wasting
    # compute on padded rows for tiny demo batches).
    if tb is None:
        tb = 128 if B >= 128 else _round_up(B, 8)
    Bp = _round_up(B, tb)

    dt = x_flat.dtype
    x_p = jnp.zeros((Bp, Fp), dt).at[:B, :F].set(x_flat)
    w1_p = jnp.zeros((Fp, Hp), w1.dtype).at[:F, :H].set(w1)
    b1_p = jnp.zeros((1, Hp), b1.dtype).at[0, :H].set(b1)
    w2_p = jnp.zeros((Hp, Fp), w2.dtype).at[:H, :F].set(w2)
    b2_p = jnp.zeros((1, Fp), b2.dtype).at[0, :F].set(b2)

    grid = (Bp // tb,)

    itemsize = jnp.dtype(dt).itemsize
    flops = 2 * 2 * Bp * Fp * Hp  # two matmuls, 2 flops per MAC
    bytes_accessed = (
        x_p.size + w1_p.size + b1_p.size + w2_p.size + b2_p.size + Bp * Fp
    ) * itemsize

    out_p = pl.pallas_call(
        dae_kernel,
        out_shape=jax.ShapeDtypeStruct((Bp, Fp), dt),
        grid=grid,
        in_specs=[
            pl.BlockSpec((tb, Fp), lambda i: (i, 0)),   # x: pipelined over batch
            pl.BlockSpec((Fp, Hp), lambda i: (0, 0)),   # W1: VMEM-resident
            pl.BlockSpec((1, Hp), lambda i: (0, 0)),    # b1: VMEM-resident
            pl.BlockSpec((Hp, Fp), lambda i: (0, 0)),   # W2: VMEM-resident
            pl.BlockSpec((1, Fp), lambda i: (0, 0)),    # b2: VMEM-resident
        ],
        out_specs=pl.BlockSpec((tb, Fp), lambda i: (i, 0)),
        compiler_params=pltpu.CompilerParams(
            dimension_semantics=("parallel",),
        ),
        cost_estimate=pl.CostEstimate(
            flops=flops, transcendentals=0, bytes_accessed=bytes_accessed
        ),
    )(x_p, w1_p, b1_p, w2_p, b2_p)

    return out_p[:B, :F]


if __name__ == "__main__":
    # Small shapes implied by the module: flatten(NCHW) -> Linear -> Dropout -> Linear.
    B, C, Himg, Wimg = 2, 4, 16, 16        # input_size = C*H*W = 1024
    input_size = C * Himg * Wimg
    hidden_size = 32                       # deliberately non-128-aligned to exercise padding

    key = jax.random.PRNGKey(0)
    kx, kw1, kb1, kw2, kb2 = jax.random.split(key, 5)

    x = jax.random.normal(kx, (B, C, Himg, Wimg), dtype=jnp.float32)

    # Deterministic PyTorch-Linear-style init: U(-1/sqrt(fan_in), 1/sqrt(fan_in)).
    bound1 = 1.0 / (input_size ** 0.5)
    w1 = jax.random.uniform(kw1, (input_size, hidden_size), jnp.float32, -bound1, bound1)
    b1 = jax.random.uniform(kb1, (hidden_size,), jnp.float32, -bound1, bound1)

    bound2 = 1.0 / (hidden_size ** 0.5)
    w2 = jax.random.uniform(kw2, (hidden_size, input_size), jnp.float32, -bound2, bound2)
    b2 = jax.random.uniform(kb2, (input_size,), jnp.float32, -bound2, bound2)

    out = denoising_autoencoder(x, w1, b1, w2, b2)
    out = jax.block_until_ready(out)

    # Pure-JAX reference check (eval-mode dropout == identity).
    ref = (x.reshape(B, -1) @ w1 + b1) @ w2 + b2
    assert out.shape == (B, input_size)
    assert jnp.allclose(out, ref, atol=1e-4, rtol=1e-4)

    print("KERNEL_OK")
</pallas_src>

<mosaic_0001>
module attributes {stable_mosaic.version = 11 : i64} {
  func.func @dae_kernel(%arg0: i32, %arg1: memref<8x1024xf32, #tpu.memory_space<vmem>>, %arg2: memref<1024x128xf32, #tpu.memory_space<vmem>>, %arg3: memref<1x128xf32, #tpu.memory_space<vmem>>, %arg4: memref<128x1024xf32, #tpu.memory_space<vmem>>, %arg5: memref<1x1024xf32, #tpu.memory_space<vmem>>, %arg6: memref<8x1024xf32, #tpu.memory_space<vmem>>) attributes {dimension_semantics = [#tpu.dimension_semantics<parallel>], iteration_bounds = array<i64: 1>, scalar_prefetch = 0 : i64, scratch_operands = 0 : i64, tpu.core_type = #tpu.core_type<tc>, window_params = [{transform_indices = @transform_0, window_bounds = array<i64: 8, 1024>}, {pipeline_mode = #tpu.pipeline_mode<synchronous>, transform_indices = @transform_1, window_bounds = array<i64: 1024, 128>}, {pipeline_mode = #tpu.pipeline_mode<synchronous>, transform_indices = @transform_2, window_bounds = array<i64: 1, 128>}, {pipeline_mode = #tpu.pipeline_mode<synchronous>, transform_indices = @transform_3, window_bounds = array<i64: 128, 1024>}, {pipeline_mode = #tpu.pipeline_mode<synchronous>, transform_indices = @transform_4, window_bounds = array<i64: 1, 1024>}, {transform_indices = @transform_5, window_bounds = array<i64: 8, 1024>}]} {
    %c0 = arith.constant 0 : index
    %c0_0 = arith.constant 0 : index
    %0 = vector.load %arg1[%c0, %c0_0] : memref<8x1024xf32, #tpu.memory_space<vmem>>, vector<8x1024xf32>
    %c0_1 = arith.constant 0 : index
    %c0_2 = arith.constant 0 : index
    %1 = vector.load %arg2[%c0_1, %c0_2] : memref<1024x128xf32, #tpu.memory_space<vmem>>, vector<1024x128xf32>
    %cst = arith.constant dense<0.000000e+00> : vector<8x128xf32>
    %2 = tpu.matmul %0, %1, %cst {dimension_numbers = #tpu.dot_dimension_numbers<[1], [0], [0], [1], [0, 0, 1, 1], [], []>} : vector<8x1024xf32>, vector<1024x128xf32>, vector<8x128xf32> -> vector<8x128xf32>
    %c0_3 = arith.constant 0 : index
    %c0_4 = arith.constant 0 : index
    %3 = vector.load %arg3[%c0_3, %c0_4] : memref<1x128xf32, #tpu.memory_space<vmem>>, vector<1x128xf32>
    %4 = vector.broadcast %3 : vector<1x128xf32> to vector<8x128xf32>
    %5 = arith.addf %2, %4 : vector<8x128xf32>
    %c0_5 = arith.constant 0 : index
    %c0_6 = arith.constant 0 : index
    %6 = vector.load %arg4[%c0_5, %c0_6] : memref<128x1024xf32, #tpu.memory_space<vmem>>, vector<128x1024xf32>
    %cst_7 = arith.constant dense<0.000000e+00> : vector<8x1024xf32>
    %7 = tpu.matmul %5, %6, %cst_7 {dimension_numbers = #tpu.dot_dimension_numbers<[1], [0], [0], [1], [0, 0, 1, 1], [], []>} : vector<8x128xf32>, vector<128x1024xf32>, vector<8x1024xf32> -> vector<8x1024xf32>
    %c0_8 = arith.constant 0 : index
    %c0_9 = arith.constant 0 : index
    %8 = vector.load %arg5[%c0_8, %c0_9] : memref<1x1024xf32, #tpu.memory_space<vmem>>, vector<1x1024xf32>
    %9 = vector.broadcast %8 : vector<1x1024xf32> to vector<8x1024xf32>
    %10 = arith.addf %7, %9 : vector<8x1024xf32>
    %c0_10 = arith.constant 0 : index
    %c0_11 = arith.constant 0 : index
    %11 = vector.load %arg6[%c0_10, %c0_11] : memref<8x1024xf32, #tpu.memory_space<vmem>>, vector<8x1024xf32>
    tpu.vector_store %arg6[%c0_10, %c0_11], %10 {strides = array<i32>} : memref<8x1024xf32, #tpu.memory_space<vmem>>, vector<8x1024xf32>,
    return
  }
  func.func @transform_0(%arg0: i32) -> (i32, i32) {
    %c0_i32 = arith.constant 0 : i32
    %c0_i32_0 = arith.constant 0 : i32
    return %arg0, %c0_i32 : i32, i32
  }
  func.func @transform_1(%arg0: i32) -> (i32, i32) {
    %c0_i32 = arith.constant 0 : i32
    %c0_i32_0 = arith.constant 0 : i32
    %c0_i32_1 = arith.constant 0 : i32
    return %c0_i32, %c0_i32_0 : i32, i32
  }
  func.func @transform_2(%arg0: i32) -> (i32, i32) {
    %c0_i32 = arith.constant 0 : i32
    %c0_i32_0 = arith.constant 0 : i32
    %c0_i32_1 = arith.constant 0 : i32
    return %c0_i32, %c0_i32_0 : i32, i32
  }
  func.func @transform_3(%arg0: i32) -> (i32, i32) {
    %c0_i32 = arith.constant 0 : i32
    %c0_i32_0 = arith.constant 0 : i32
    %c0_i32_1 = arith.constant 0 : i32
    return %c0_i32, %c0_i32_0 : i32, i32
  }
  func.func @transform_4(%arg0: i32) -> (i32, i32) {
    %c0_i32 = arith.constant 0 : i32
    %c0_i32_0 = arith.constant 0 : i32
    %c0_i32_1 = arith.constant 0 : i32
    return %c0_i32, %c0_i32_0 : i32, i32
  }
  func.func @transform_5(%arg0: i32) -> (i32, i32) {
    %c0_i32 = arith.constant 0 : i32
    %c0_i32_0 = arith.constant 0 : i32
    return %arg0, %c0_i32 : i32, i32
  }
}

</mosaic_0001>

<llo_original>
// kernel: tpu_custom_call.1
$region0: #{tpu_custom_call.1}
  #allocation0 [shape = 'u32[]', space=smem, size = 0x4, offset = 0x4, fixed_abs, tag = 'smem constant byte address 0x4 - core index']
  #allocation1 [shape = 'u32[72,128]{1,0:T(1,128)}', space=vmem, size = 0x9000, scoped, tag = 'internal scratch']
  %s0 = inlined_call_operand.hbm [shape: f32[8,1024], index: 0, kind: input, shape index: {}]
  %s1 = inlined_call_operand.hbm [shape: f32[1024,128], index: 1, kind: input, shape index: {}]
  %s2 = inlined_call_operand.vmem [shape: f32[1,128], index: 2, kind: input, shape index: {}]
  %s3 = inlined_call_operand.hbm [shape: f32[128,1024], index: 3, kind: input, shape index: {}]
  %s4 = inlined_call_operand.hbm [shape: f32[1,1024], index: 4, kind: input, shape index: {}]
  %s5 = inlined_call_operand.hbm [shape: f32[8,1024], index: 5, kind: output, shape index: {}]
  %s6 = sld [smem:[#allocation0]]
  $region46: #{tpu_custom_call.1} parent=0
    _
  %s8 = ssub.s32 1, %s6
  %s9 = scalar_select 0, %s8, %s6
  $region1: #{tpu_custom_call.1} parent=0
    #allocation2 [shape = 'u8[32768]{0}', space=vmem, size = 0x8000, scoped, tag = 'input window, operand 0, single buffered']
    #allocation3 [shape = 's32[1]{0}', space=sflag, size = 0x4, scoped, tag = 'scoped memory for tpu_custom_call.1']
    #allocation4 [shape = 's32[1]{0}', space=sflag, size = 0x4, scoped, tag = 'scoped memory for tpu_custom_call.1']
    #allocation5 [shape = 'u8[524288]{0}', space=vmem, size = 0x80000, scoped, tag = 'input window, operand 1, single buffered']
    #allocation6 [shape = 's32[1]{0}', space=sflag, size = 0x4, scoped, tag = 'scoped memory for tpu_custom_call.1']
    #allocation7 [shape = 'u8[524288]{0}', space=vmem, size = 0x80000, scoped, tag = 'input window, operand 3, single buffered']
    #allocation8 [shape = 'u8[4096]{0}', space=vmem, size = 0x1000, scoped, tag = 'input window, operand 4, single buffered']
    #allocation9 [shape = 's32[1]{0}', space=sflag, size = 0x4, scoped, tag = 'scoped memory for tpu_custom_call.1']
    #allocation10 [shape = 'u8[32768]{0}', space=vmem, size = 0x8000, scoped, tag = 'output window, operand 0, single buffered']
    %10 = vsyncpa [#allocation3], 0
    %11 = vsyncpa [#allocation6], 0
    %12 = vsyncpa [#allocation9], 0
    %13 = vsyncpa [#allocation4], 0
    // Predicated region
    $region2: #{tpu_custom_call.1} parent=1 // pred_check
      _
    $region3: #{tpu_custom_call.1} parent=1 // pred_check_branch
      %15 = sbr.rel (0) target = $region5
    $region4: #{tpu_custom_call.1} parent=1 // pred_region
      %17 = vsyncadd [#allocation3], 0
      %s19 = sshll.u32 %s0, 4
      %s20 = int_to_ptr.hbm [resolvable:$true] %s19
      %s21 = sshll.u32 [#allocation2], 4
      %s22 = int_to_ptr.vmem [resolvable:$true] %s21
      %24 = dma.hbm_to_vmem [thread:$0]  %s20, 1024, %s22, [#allocation3]
    $region5: #{tpu_custom_call.1} parent=1 // pred_fallthru
      _
    // Predicated region
    $region6: #{tpu_custom_call.1} parent=1 // pred_check
      _
    $region7: #{tpu_custom_call.1} parent=1 // pred_check_branch
      %26 = sbr.rel (0) target = $region9
    $region8: #{tpu_custom_call.1} parent=1 // pred_region
      %28 = vsyncadd [#allocation6], 0
      %s29 = sshll.u32 %s1, 4
      %s30 = int_to_ptr.hbm [resolvable:$true] %s29
      %s31 = sshll.u32 [#allocation5], 4
      %s32 = int_to_ptr.vmem [resolvable:$true] %s31
      %37 = dma.hbm_to_vmem [thread:$0]  %s30, 16384, %s32, [#allocation6], 128, 128, 8
    $region9: #{tpu_custom_call.1} parent=1 // pred_fallthru
      _
    // Predicated region
    $region10: #{tpu_custom_call.1} parent=1 // pred_check
      _
    $region11: #{tpu_custom_call.1} parent=1 // pred_check_branch
      %39 = sbr.rel (0) target = $region13
    $region12: #{tpu_custom_call.1} parent=1 // pred_region
      _
    $region13: #{tpu_custom_call.1} parent=1 // pred_fallthru
      _
    // Predicated region
    $region14: #{tpu_custom_call.1} parent=1 // pred_check
      _
    $region15: #{tpu_custom_call.1} parent=1 // pred_check_branch
      %41 = sbr.rel (0) target = $region17
    $region16: #{tpu_custom_call.1} parent=1 // pred_region
      %43 = vsyncadd [#allocation6], 0
      %s44 = sshll.u32 %s3, 4
      %s45 = int_to_ptr.hbm [resolvable:$true] %s44
      %s46 = sshll.u32 [#allocation7], 4
      %s47 = int_to_ptr.vmem [resolvable:$true] %s46
      %52 = dma.hbm_to_vmem [thread:$0]  %s45, 16384, %s47, [#allocation6], 1024, 1024, 64
    $region17: #{tpu_custom_call.1} parent=1 // pred_fallthru
      _
    // Predicated region
    $region18: #{tpu_custom_call.1} parent=1 // pred_check
      _
    $region19: #{tpu_custom_call.1} parent=1 // pred_check_branch
      %54 = sbr.rel (0) target = $region21
    $region20: #{tpu_custom_call.1} parent=1 // pred_region
      %56 = vsyncadd [#allocation9], 0
      %s58 = sshll.u32 %s4, 4
      %s59 = int_to_ptr.hbm [resolvable:$true] %s58
      %s60 = sshll.u32 [#allocation8], 4
      %s61 = int_to_ptr.vmem [resolvable:$true] %s60
      %63 = dma.hbm_to_vmem [thread:$0]  %s59, 128, %s61, [#allocation9]
    $region21: #{tpu_custom_call.1} parent=1 // pred_fallthru
      _
    // Predicated region
    $region22: #{tpu_custom_call.1} parent=1 // pred_check
      _
    $region23: #{tpu_custom_call.1} parent=1 // pred_check_branch
      %65 = sbr.rel (0) target = $region25
    $region24: #{tpu_custom_call.1} parent=1 // pred_region
      %67 = dma.done [#allocation3], 1024
    $region25: #{tpu_custom_call.1} parent=1 // pred_fallthru
      _
    // Predicated region
    $region26: #{tpu_custom_call.1} parent=1 // pred_check
      _
    $region27: #{tpu_custom_call.1} parent=1 // pred_check_branch
      %69 = sbr.rel (0) target = $region29
    $region28: #{tpu_custom_call.1} parent=1 // pred_region
      %71 = dma.done [#allocation6], 16384
    $region29: #{tpu_custom_call.1} parent=1 // pred_fallthru
      _
    // Predicated region
    $region30: #{tpu_custom_call.1} parent=1 // pred_check
      _
    $region31: #{tpu_custom_call.1} parent=1 // pred_check_branch
      %73 = sbr.rel (0) target = $region33
    $region32: #{tpu_custom_call.1} parent=1 // pred_region
      %75 = dma.done [#allocation6], 16384
    $region33: #{tpu_custom_call.1} parent=1 // pred_fallthru
      _
    // Predicated region
    $region34: #{tpu_custom_call.1} parent=1 // pred_check
      _
    $region35: #{tpu_custom_call.1} parent=1 // pred_check_branch
      %77 = sbr.rel (0) target = $region37
    $region36: #{tpu_custom_call.1} parent=1 // pred_region
      %79 = dma.done [#allocation9], 128
    $region37: #{tpu_custom_call.1} parent=1 // pred_fallthru
      _
    %v80 = vld [vmem:[#allocation2] sm:$0xff]
    %v81 = vld [vmem:[#allocation2 + $0x8] sm:$0xff]
    %v82 = vld [vmem:[#allocation2 + $0x10] sm:$0xff]
    %v83 = vld [vmem:[#allocation2 + $0x18] sm:$0xff]
    %v84 = vld [vmem:[#allocation2 + $0x20] sm:$0xff]
    %v85 = vld [vmem:[#allocation2 + $0x28] sm:$0xff]
    %v86 = vld [vmem:[#allocation2 + $0x30] sm:$0xff]
    %v87 = vld [vmem:[#allocation2 + $0x38] sm:$0xff]
    %v88 = vld [vmem:[#allocation5] sm:$0xff]
    %v89 = vld [vmem:[#allocation5 + $0x8] sm:$0xff]
    %v90 = vld [vmem:[#allocation5 + $0x10] sm:$0xff]
    %v91 = vld [vmem:[#allocation5 + $0x18] sm:$0xff]
    %v92 = vld [vmem:[#allocation5 + $0x20] sm:$0xff]
    %v93 = vld [vmem:[#allocation5 + $0x28] sm:$0xff]
    %v94 = vld [vmem:[#allocation5 + $0x30] sm:$0xff]
    %v95 = vld [vmem:[#allocation5 + $0x38] sm:$0xff]
    %v96 = vld [vmem:[#allocation5 + $0x40] sm:$0xff]
    %v97 = vld [vmem:[#allocation5 + $0x48] sm:$0xff]
    %v98 = vld [vmem:[#allocation5 + $0x50] sm:$0xff]
    %v99 = vld [vmem:[#allocation5 + $0x58] sm:$0xff]
    %v100 = vld [vmem:[#allocation5 + $0x60] sm:$0xff]
    %v101 = vld [vmem:[#allocation5 + $0x68] sm:$0xff]
    %v102 = vld [vmem:[#allocation5 + $0x70] sm:$0xff]
    %v103 = vld [vmem:[#allocation5 + $0x78] sm:$0xff]
    %v104 = vld [vmem:[#allocation5 + $0x80] sm:$0xff]
    %v105 = vld [vmem:[#allocation5 + $0x88] sm:$0xff]
    %v106 = vld [vmem:[#allocation5 + $0x90] sm:$0xff]
    %v107 = vld [vmem:[#allocation5 + $0x98] sm:$0xff]
    %v108 = vld [vmem:[#allocation5 + $0xa0] sm:$0xff]
    %v109 = vld [vmem:[#allocation5 + $0xa8] sm:$0xff]
    %v110 = vld [vmem:[#allocation5 + $0xb0] sm:$0xff]
    %v111 = vld [vmem:[#allocation5 + $0xb8] sm:$0xff]
    %v112 = vld [vmem:[#allocation5 + $0xc0] sm:$0xff]
    %v113 = vld [vmem:[#allocation5 + $0xc8] sm:$0xff]
    %v114 = vld [vmem:[#allocation5 + $0xd0] sm:$0xff]
    %v115 = vld [vmem:[#allocation5 + $0xd8] sm:$0xff]
    %v116 = vld [vmem:[#allocation5 + $0xe0] sm:$0xff]
    %v117 = vld [vmem:[#allocation5 + $0xe8] sm:$0xff]
    %v118 = vld [vmem:[#allocation5 + $0xf0] sm:$0xff]
    %v119 = vld [vmem:[#allocation5 + $0xf8] sm:$0xff]
    %v120 = vld [vmem:[#allocation5 + $0x100] sm:$0xff]
    %v121 = vld [vmem:[#allocation5 + $0x108] sm:$0xff]
    %v122 = vld [vmem:[#allocation5 + $0x110] sm:$0xff]
    %v123 = vld [vmem:[#allocation5 + $0x118] sm:$0xff]
    %v124 = vld [vmem:[#allocation5 + $0x120] sm:$0xff]
    %v125 = vld [vmem:[#allocation5 + $0x128] sm:$0xff]
    %v126 = vld [vmem:[#allocation5 + $0x130] sm:$0xff]
    %v127 = vld [vmem:[#allocation5 + $0x138] sm:$0xff]
    %v128 = vld [vmem:[#allocation5 + $0x140] sm:$0xff]
    %v129 = vld [vmem:[#allocation5 + $0x148] sm:$0xff]
    %v130 = vld [vmem:[#allocation5 + $0x150] sm:$0xff]
    %v131 = vld [vmem:[#allocation5 + $0x158] sm:$0xff]
    %v132 = vld [vmem:[#allocation5 + $0x160] sm:$0xff]
    %v133 = vld [vmem:[#allocation5 + $0x168] sm:$0xff]
    %v134 = vld [vmem:[#allocation5 + $0x170] sm:$0xff]
    %v135 = vld [vmem:[#allocation5 + $0x178] sm:$0xff]
    %v136 = vld [vmem:[#allocation5 + $0x180] sm:$0xff]
    %v137 = vld [vmem:[#allocation5 + $0x188] sm:$0xff]
    %v138 = vld [vmem:[#allocation5 + $0x190] sm:$0xff]
    %v139 = vld [vmem:[#allocation5 + $0x198] sm:$0xff]
    %v140 = vld [vmem:[#allocation5 + $0x1a0] sm:$0xff]
    %v141 = vld [vmem:[#allocation5 + $0x1a8] sm:$0xff]
    %v142 = vld [vmem:[#allocation5 + $0x1b0] sm:$0xff]
    %v143 = vld [vmem:[#allocation5 + $0x1b8] sm:$0xff]
    %v144 = vld [vmem:[#allocation5 + $0x1c0] sm:$0xff]
    %v145 = vld [vmem:[#allocation5 + $0x1c8] sm:$0xff]
    %v146 = vld [vmem:[#allocation5 + $0x1d0] sm:$0xff]
    %v147 = vld [vmem:[#allocation5 + $0x1d8] sm:$0xff]
    %v148 = vld [vmem:[#allocation5 + $0x1e0] sm:$0xff]
    %v149 = vld [vmem:[#allocation5 + $0x1e8] sm:$0xff]
    %v150 = vld [vmem:[#allocation5 + $0x1f0] sm:$0xff]
    %v151 = vld [vmem:[#allocation5 + $0x1f8] sm:$0xff]
    %v152 = vld [vmem:[#allocation5 + $0x200] sm:$0xff]
    %v153 = vld [vmem:[#allocation5 + $0x208] sm:$0xff]
    %v154 = vld [vmem:[#allocation5 + $0x210] sm:$0xff]
    %v155 = vld [vmem:[#allocation5 + $0x218] sm:$0xff]
    %v156 = vld [vmem:[#allocation5 + $0x220] sm:$0xff]
    %v157 = vld [vmem:[#allocation5 + $0x228] sm:$0xff]
    %v158 = vld [vmem:[#allocation5 + $0x230] sm:$0xff]
    %v159 = vld [vmem:[#allocation5 + $0x238] sm:$0xff]
    %v160 = vld [vmem:[#allocation5 + $0x240] sm:$0xff]
    %v161 = vld [vmem:[#allocation5 + $0x248] sm:$0xff]
    %v162 = vld [vmem:[#allocation5 + $0x250] sm:$0xff]
    %v163 = vld [vmem:[#allocation5 + $0x258] sm:$0xff]
    %v164 = vld [vmem:[#allocation5 + $0x260] sm:$0xff]
    %v165 = vld [vmem:[#allocation5 + $0x268] sm:$0xff]
    %v166 = vld [vmem:[#allocation5 + $0x270] sm:$0xff]
    %v167 = vld [vmem:[#allocation5 + $0x278] sm:$0xff]
    %v168 = vld [vmem:[#allocation5 + $0x280] sm:$0xff]
    %v169 = vld [vmem:[#allocation5 + $0x288] sm:$0xff]
    %v170 = vld [vmem:[#allocation5 + $0x290] sm:$0xff]
    %v171 = vld [vmem:[#allocation5 + $0x298] sm:$0xff]
    %v172 = vld [vmem:[#allocation5 + $0x2a0] sm:$0xff]
    %v173 = vld [vmem:[#allocation5 + $0x2a8] sm:$0xff]
    %v174 = vld [vmem:[#allocation5 + $0x2b0] sm:$0xff]
    %v175 = vld [vmem:[#allocation5 + $0x2b8] sm:$0xff]
    %v176 = vld [vmem:[#allocation5 + $0x2c0] sm:$0xff]
    %v177 = vld [vmem:[#allocation5 + $0x2c8] sm:$0xff]
    %v178 = vld [vmem:[#allocation5 + $0x2d0] sm:$0xff]
    %v179 = vld [vmem:[#allocation5 + $0x2d8] sm:$0xff]
    %v180 = vld [vmem:[#allocation5 + $0x2e0] sm:$0xff]
    %v181 = vld [vmem:[#allocation5 + $0x2e8] sm:$0xff]
    %v182 = vld [vmem:[#allocation5 + $0x2f0] sm:$0xff]
    %v183 = vld [vmem:[#allocation5 + $0x2f8] sm:$0xff]
    %v184 = vld [vmem:[#allocation5 + $0x300] sm:$0xff]
    %v185 = vld [vmem:[#allocation5 + $0x308] sm:$0xff]
    %v186 = vld [vmem:[#allocation5 + $0x310] sm:$0xff]
    %v187 = vld [vmem:[#allocation5 + $0x318] sm:$0xff]
    %v188 = vld [vmem:[#allocation5 + $0x320] sm:$0xff]
    %v189 = vld [vmem:[#allocation5 + $0x328] sm:$0xff]
    %v190 = vld [vmem:[#allocation5 + $0x330] sm:$0xff]
    %v191 = vld [vmem:[#allocation5 + $0x338] sm:$0xff]
    %v192 = vld [vmem:[#allocation5 + $0x340] sm:$0xff]
    %v193 = vld [vmem:[#allocation5 + $0x348] sm:$0xff]
    %v194 = vld [vmem:[#allocation5 + $0x350] sm:$0xff]
    %v195 = vld [vmem:[#allocation5 + $0x358] sm:$0xff]
    %v196 = vld [vmem:[#allocation5 + $0x360] sm:$0xff]
    %v197 = vld [vmem:[#allocation5 + $0x368] sm:$0xff]
    %v198 = vld [vmem:[#allocation5 + $0x370] sm:$0xff]
    %v199 = vld [vmem:[#allocation5 + $0x378] sm:$0xff]
    %v200 = vld [vmem:[#allocation5 + $0x380] sm:$0xff]
    %v201 = vld [vmem:[#allocation5 + $0x388] sm:$0xff]
    %v202 = vld [vmem:[#allocation5 + $0x390] sm:$0xff]
    %v203 = vld [vmem:[#allocation5 + $0x398] sm:$0xff]
    %v204 = vld [vmem:[#allocation5 + $0x3a0] sm:$0xff]
    %v205 = vld [vmem:[#allocation5 + $0x3a8] sm:$0xff]
    %v206 = vld [vmem:[#allocation5 + $0x3b0] sm:$0xff]
    %v207 = vld [vmem:[#allocation5 + $0x3b8] sm:$0xff]
    %v208 = vld [vmem:[#allocation5 + $0x3c0] sm:$0xff]
    %v209 = vld [vmem:[#allocation5 + $0x3c8] sm:$0xff]
    %v210 = vld [vmem:[#allocation5 + $0x3d0] sm:$0xff]
    %v211 = vld [vmem:[#allocation5 + $0x3d8] sm:$0xff]
    %v212 = vld [vmem:[#allocation5 + $0x3e0] sm:$0xff]
    %v213 = vld [vmem:[#allocation5 + $0x3e8] sm:$0xff]
    %v214 = vld [vmem:[#allocation5 + $0x3f0] sm:$0xff]
    %v215 = vld [vmem:[#allocation5 + $0x3f8] sm:$0xff]
    %v216 = vld [vmem:[%s2] sm:$0x1]
    %v218 = vperm.slane %v216, 0
    %220 = vmatpush.msra.mxu0 %v103
    %221 = vmatpush.msra.mxu0 %v102
    %222 = vmatpush.msra.mxu0 %v101
    %223 = vmatpush.msra.mxu0 %v100
    %224 = vmatpush.msra.mxu0 %v99
    %225 = vmatpush.msra.mxu0 %v98
    %226 = vmatpush.msra.mxu0 %v97
    %227 = vmatpush.msra.mxu0 %v96
    %228 = vmatpush.msra.mxu0 %v95
    %229 = vmatpush.msra.mxu0 %v94
    %230 = vmatpush.msra.mxu0 %v93
    %231 = vmatpush.msra.mxu0 %v92
    %232 = vmatpush.msra.mxu0 %v91
    %233 = vmatpush.msra.mxu0 %v90
    %234 = vmatpush.msra.mxu0 %v89
    %235 = vmatpush.msra.mxu0 %v88
    %236 = vmatmul.f32.gmra.mxu0 %v80
    %v237 = vpop.f32.mrf.mxu0
    %v238 = vadd.f32 %v218, %v237
    %239 = vdwg.mxu0
    %240 = vmatpush.msra.mxu0 %v119
    %241 = vmatpush.msra.mxu0 %v118
    %242 = vmatpush.msra.mxu0 %v117
    %243 = vmatpush.msra.mxu0 %v116
    %244 = vmatpush.msra.mxu0 %v115
    %245 = vmatpush.msra.mxu0 %v114
    %246 = vmatpush.msra.mxu0 %v113
    %247 = vmatpush.msra.mxu0 %v112
    %248 = vmatpush.msra.mxu0 %v111
    %249 = vmatpush.msra.mxu0 %v110
    %250 = vmatpush.msra.mxu0 %v109
    %251 = vmatpush.msra.mxu0 %v108
    %252 = vmatpush.msra.mxu0 %v107
    %253 = vmatpush.msra.mxu0 %v106
    %254 = vmatpush.msra.mxu0 %v105
    %255 = vmatpush.msra.mxu0 %v104
    %256 = vmatmul.f32.gmra.mxu0 %v81
    %v257 = vpop.f32.mrf.mxu0
    %v258 = vadd.f32 %v238, %v257
    %259 = vdwg.mxu0
    %260 = vmatpush.msra.mxu0 %v135
    %261 = vmatpush.msra.mxu0 %v134
    %262 = vmatpush.msra.mxu0 %v133
    %263 = vmatpush.msra.mxu0 %v132
    %264 = vmatpush.msra.mxu0 %v131
    %265 = vmatpush.msra.mxu0 %v130
    %266 = vmatpush.msra.mxu0 %v129
    %267 = vmatpush.msra.mxu0 %v128
    %268 = vmatpush.msra.mxu0 %v127
    %269 = vmatpush.msra.mxu0 %v126
    %270 = vmatpush.msra.mxu0 %v125
    %271 = vmatpush.msra.mxu0 %v124
    %272 = vmatpush.msra.mxu0 %v123
    %273 = vmatpush.msra.mxu0 %v122
    %274 = vmatpush.msra.mxu0 %v121
    %275 = vmatpush.msra.mxu0 %v120
    %276 = vmatmul.f32.gmra.mxu0 %v82
    %v277 = vpop.f32.mrf.mxu0
    %v278 = vadd.f32 %v258, %v277
    %279 = vdwg.mxu0
    %280 = vmatpush.msra.mxu0 %v151
    %281 = vmatpush.msra.mxu0 %v150
    %282 = vmatpush.msra.mxu0 %v149
    %283 = vmatpush.msra.mxu0 %v148
    %284 = vmatpush.msra.mxu0 %v147
    %285 = vmatpush.msra.mxu0 %v146
    %286 = vmatpush.msra.mxu0 %v145
    %287 = vmatpush.msra.mxu0 %v144
    %288 = vmatpush.msra.mxu0 %v143
    %289 = vmatpush.msra.mxu0 %v142
    %290 = vmatpush.msra.mxu0 %v141
    %291 = vmatpush.msra.mxu0 %v140
    %292 = vmatpush.msra.mxu0 %v139
    %293 = vmatpush.msra.mxu0 %v138
    %294 = vmatpush.msra.mxu0 %v137
    %295 = vmatpush.msra.mxu0 %v136
    %296 = vmatmul.f32.gmra.mxu0 %v83
    %v297 = vpop.f32.mrf.mxu0
    %v298 = vadd.f32 %v278, %v297
    %299 = vdwg.mxu0
    %300 = vmatpush.msra.mxu0 %v167
    %301 = vmatpush.msra.mxu0 %v166
    %302 = vmatpush.msra.mxu0 %v165
    %303 = vmatpush.msra.mxu0 %v164
    %304 = vmatpush.msra.mxu0 %v163
    %305 = vmatpush.msra.mxu0 %v162
    %306 = vmatpush.msra.mxu0 %v161
    %307 = vmatpush.msra.mxu0 %v160
    %308 = vmatpush.msra.mxu0 %v159
    %309 = vmatpush.msra.mxu0 %v158
    %310 = vmatpush.msra.mxu0 %v157
    %311 = vmatpush.msra.mxu0 %v156
    %312 = vmatpush.msra.mxu0 %v155
    %313 = vmatpush.msra.mxu0 %v154
    %314 = vmatpush.msra.mxu0 %v153
    %315 = vmatpush.msra.mxu0 %v152
    %316 = vmatmul.f32.gmra.mxu0 %v84
    %v317 = vpop.f32.mrf.mxu0
    %v318 = vadd.f32 %v298, %v317
    %319 = vdwg.mxu0
    %320 = vmatpush.msra.mxu0 %v183
    %321 = vmatpush.msra.mxu0 %v182
    %322 = vmatpush.msra.mxu0 %v181
    %323 = vmatpush.msra.mxu0 %v180
    %324 = vmatpush.msra.mxu0 %v179
    %325 = vmatpush.msra.mxu0 %v178
    %326 = vmatpush.msra.mxu0 %v177
    %327 = vmatpush.msra.mxu0 %v176
    %328 = vmatpush.msra.mxu0 %v175
    %329 = vmatpush.msra.mxu0 %v174
    %330 = vmatpush.msra.mxu0 %v173
    %331 = vmatpush.msra.mxu0 %v172
    %332 = vmatpush.msra.mxu0 %v171
    %333 = vmatpush.msra.mxu0 %v170
    %334 = vmatpush.msra.mxu0 %v169
    %335 = vmatpush.msra.mxu0 %v168
    %336 = vmatmul.f32.gmra.mxu0 %v85
    %v337 = vpop.f32.mrf.mxu0
    %v338 = vadd.f32 %v318, %v337
    %339 = vdwg.mxu0
    %340 = vmatpush.msra.mxu0 %v199
    %341 = vmatpush.msra.mxu0 %v198
    %342 = vmatpush.msra.mxu0 %v197
    %343 = vmatpush.msra.mxu0 %v196
    %344 = vmatpush.msra.mxu0 %v195
    %345 = vmatpush.msra.mxu0 %v194
    %346 = vmatpush.msra.mxu0 %v193
    %347 = vmatpush.msra.mxu0 %v192
    %348 = vmatpush.msra.mxu0 %v191
    %349 = vmatpush.msra.mxu0 %v190
    %350 = vmatpush.msra.mxu0 %v189
    %351 = vmatpush.msra.mxu0 %v188
    %352 = vmatpush.msra.mxu0 %v187
    %353 = vmatpush.msra.mxu0 %v186
    %354 = vmatpush.msra.mxu0 %v185
    %355 = vmatpush.msra.mxu0 %v184
    %356 = vmatmul.f32.gmra.mxu0 %v86
    %v357 = vpop.f32.mrf.mxu0
    %v358 = vadd.f32 %v338, %v357
    %359 = vdwg.mxu0
    %360 = vmatpush.msra.mxu0 %v215
    %361 = vmatpush.msra.mxu0 %v214
    %362 = vmatpush.msra.mxu0 %v213
    %363 = vmatpush.msra.mxu0 %v212
    %364 = vmatpush.msra.mxu0 %v211
    %365 = vmatpush.msra.mxu0 %v210
    %366 = vmatpush.msra.mxu0 %v209
    %367 = vmatpush.msra.mxu0 %v208
    %368 = vmatpush.msra.mxu0 %v207
    %369 = vmatpush.msra.mxu0 %v206
    %370 = vmatpush.msra.mxu0 %v205
    %371 = vmatpush.msra.mxu0 %v204
    %372 = vmatpush.msra.mxu0 %v203
    %373 = vmatpush.msra.mxu0 %v202
    %374 = vmatpush.msra.mxu0 %v201
    %375 = vmatpush.msra.mxu0 %v200
    %376 = vmatmul.f32.gmra.mxu0 %v87
    %v377 = vpop.f32.mrf.mxu0
    %v378 = vadd.f32 %v358, %v377
    %379 = vdwg.mxu0
    %v380 = vld [vmem:[#allocation7] sm:$0xff]
    %v381 = vld [vmem:[#allocation7 + $0x8] sm:$0xff]
    %v382 = vld [vmem:[#allocation7 + $0x10] sm:$0xff]
    %v383 = vld [vmem:[#allocation7 + $0x18] sm:$0xff]
    %v384 = vld [vmem:[#allocation7 + $0x20] sm:$0xff]
    %v385 = vld [vmem:[#allocation7 + $0x28] sm:$0xff]
    %v386 = vld [vmem:[#allocation7 + $0x30] sm:$0xff]
    %v387 = vld [vmem:[#allocation7 + $0x38] sm:$0xff]
    %v388 = vld [vmem:[#allocation7 + $0x40] sm:$0xff]
    %v389 = vld [vmem:[#allocation7 + $0x48] sm:$0xff]
    %v390 = vld [vmem:[#allocation7 + $0x50] sm:$0xff]
    %v391 = vld [vmem:[#allocation7 + $0x58] sm:$0xff]
    %v392 = vld [vmem:[#allocation7 + $0x60] sm:$0xff]
    %v393 = vld [vmem:[#allocation7 + $0x68] sm:$0xff]
    %v394 = vld [vmem:[#allocation7 + $0x70] sm:$0xff]
    %v395 = vld [vmem:[#allocation7 + $0x78] sm:$0xff]
    %v396 = vld [vmem:[#allocation7 + $0x80] sm:$0xff]
    %v397 = vld [vmem:[#allocation7 + $0x88] sm:$0xff]
    %v398 = vld [vmem:[#allocation7 + $0x90] sm:$0xff]
    %v399 = vld [vmem:[#allocation7 + $0x98] sm:$0xff]
    %v400 = vld [vmem:[#allocation7 + $0xa0] sm:$0xff]
    %v401 = vld [vmem:[#allocation7 + $0xa8] sm:$0xff]
    %v402 = vld [vmem:[#allocation7 + $0xb0] sm:$0xff]
    %v403 = vld [vmem:[#allocation7 + $0xb8] sm:$0xff]
    %v404 = vld [vmem:[#allocation7 + $0xc0] sm:$0xff]
    %v405 = vld [vmem:[#allocation7 + $0xc8] sm:$0xff]
    %v406 = vld [vmem:[#allocation7 + $0xd0] sm:$0xff]
    %v407 = vld [vmem:[#allocation7 + $0xd8] sm:$0xff]
    %v408 = vld [vmem:[#allocation7 + $0xe0] sm:$0xff]
    %v409 = vld [vmem:[#allocation7 + $0xe8] sm:$0xff]
    %v410 = vld [vmem:[#allocation7 + $0xf0] sm:$0xff]
    %v411 = vld [vmem:[#allocation7 + $0xf8] sm:$0xff]
    %v412 = vld [vmem:[#allocation7 + $0x100] sm:$0xff]
    %v413 = vld [vmem:[#allocation7 + $0x108] sm:$0xff]
    %v414 = vld [vmem:[#allocation7 + $0x110] sm:$0xff]
    %v415 = vld [vmem:[#allocation7 + $0x118] sm:$0xff]
    %v416 = vld [vmem:[#allocation7 + $0x120] sm:$0xff]
    %v417 = vld [vmem:[#allocation7 + $0x128] sm:$0xff]
    %v418 = vld [vmem:[#allocation7 + $0x130] sm:$0xff]
    %v419 = vld [vmem:[#allocation7 + $0x138] sm:$0xff]
    %v420 = vld [vmem:[#allocation7 + $0x140] sm:$0xff]
    %v421 = vld [vmem:[#allocation7 + $0x148] sm:$0xff]
    %v422 = vld [vmem:[#allocation7 + $0x150] sm:$0xff]
    %v423 = vld [vmem:[#allocation7 + $0x158] sm:$0xff]
    %v424 = vld [vmem:[#allocation7 + $0x160] sm:$0xff]
    %v425 = vld [vmem:[#allocation7 + $0x168] sm:$0xff]
    %v426 = vld [vmem:[#allocation7 + $0x170] sm:$0xff]
    %v427 = vld [vmem:[#allocation7 + $0x178] sm:$0xff]
    %v428 = vld [vmem:[#allocation7 + $0x180] sm:$0xff]
    %v429 = vld [vmem:[#allocation7 + $0x188] sm:$0xff]
    %v430 = vld [vmem:[#allocation7 + $0x190] sm:$0xff]
    %v431 = vld [vmem:[#allocation7 + $0x198] sm:$0xff]
    %v432 = vld [vmem:[#allocation7 + $0x1a0] sm:$0xff]
    %v433 = vld [vmem:[#allocation7 + $0x1a8] sm:$0xff]
    %v434 = vld [vmem:[#allocation7 + $0x1b0] sm:$0xff]
    %v435 = vld [vmem:[#allocation7 + $0x1b8] sm:$0xff]
    %v436 = vld [vmem:[#allocation7 + $0x1c0] sm:$0xff]
    %v437 = vld [vmem:[#allocation7 + $0x1c8] sm:$0xff]
    %v438 = vld [vmem:[#allocation7 + $0x1d0] sm:$0xff]
    %v439 = vld [vmem:[#allocation7 + $0x1d8] sm:$0xff]
    %v440 = vld [vmem:[#allocation7 + $0x1e0] sm:$0xff]
    %v441 = vld [vmem:[#allocation7 + $0x1e8] sm:$0xff]
    %v442 = vld [vmem:[#allocation7 + $0x1f0] sm:$0xff]
    %v443 = vld [vmem:[#allocation7 + $0x1f8] sm:$0xff]
    %v444 = vld [vmem:[#allocation7 + $0x200] sm:$0xff]
    %v445 = vld [vmem:[#allocation7 + $0x208] sm:$0xff]
    %v446 = vld [vmem:[#allocation7 + $0x210] sm:$0xff]
    %v447 = vld [vmem:[#allocation7 + $0x218] sm:$0xff]
    %v448 = vld [vmem:[#allocation7 + $0x220] sm:$0xff]
    %v449 = vld [vmem:[#allocation7 + $0x228] sm:$0xff]
    %v450 = vld [vmem:[#allocation7 + $0x230] sm:$0xff]
    %v451 = vld [vmem:[#allocation7 + $0x238] sm:$0xff]
    %v452 = vld [vmem:[#allocation7 + $0x240] sm:$0xff]
    %v453 = vld [vmem:[#allocation7 + $0x248] sm:$0xff]
    %v454 = vld [vmem:[#allocation7 + $0x250] sm:$0xff]
    %v455 = vld [vmem:[#allocation7 + $0x258] sm:$0xff]
    %v456 = vld [vmem:[#allocation7 + $0x260] sm:$0xff]
    %v457 = vld [vmem:[#allocation7 + $0x268] sm:$0xff]
    %v458 = vld [vmem:[#allocation7 + $0x270] sm:$0xff]
    %v459 = vld [vmem:[#allocation7 + $0x278] sm:$0xff]
    %v460 = vld [vmem:[#allocation7 + $0x280] sm:$0xff]
    %v461 = vld [vmem:[#allocation7 + $0x288] sm:$0xff]
    %v462 = vld [vmem:[#allocation7 + $0x290] sm:$0xff]
    %v463 = vld [vmem:[#allocation7 + $0x298] sm:$0xff]
    %v464 = vld [vmem:[#allocation7 + $0x2a0] sm:$0xff]
    %v465 = vld [vmem:[#allocation7 + $0x2a8] sm:$0xff]
    %v466 = vld [vmem:[#allocation7 + $0x2b0] sm:$0xff]
    %v467 = vld [vmem:[#allocation7 + $0x2b8] sm:$0xff]
    %v468 = vld [vmem:[#allocation7 + $0x2c0] sm:$0xff]
    %v469 = vld [vmem:[#allocation7 + $0x2c8] sm:$0xff]
    %v470 = vld [vmem:[#allocation7 + $0x2d0] sm:$0xff]
    %v471 = vld [vmem:[#allocation7 + $0x2d8] sm:$0xff]
    %v472 = vld [vmem:[#allocation7 + $0x2e0] sm:$0xff]
    %v473 = vld [vmem:[#allocation7 + $0x2e8] sm:$0xff]
    %v474 = vld [vmem:[#allocation7 + $0x2f0] sm:$0xff]
    %v475 = vld [vmem:[#allocation7 + $0x2f8] sm:$0xff]
    %v476 = vld [vmem:[#allocation7 + $0x300] sm:$0xff]
    %v477 = vld [vmem:[#allocation7 + $0x308] sm:$0xff]
    %v478 = vld [vmem:[#allocation7 + $0x310] sm:$0xff]
    %v479 = vld [vmem:[#allocation7 + $0x318] sm:$0xff]
    %v480 = vld [vmem:[#allocation7 + $0x320] sm:$0xff]
    %v481 = vld [vmem:[#allocation7 + $0x328] sm:$0xff]
    %v482 = vld [vmem:[#allocation7 + $0x330] sm:$0xff]
    %v483 = vld [vmem:[#allocation7 + $0x338] sm:$0xff]
    %v484 = vld [vmem:[#allocation7 + $0x340] sm:$0xff]
    %v485 = vld [vmem:[#allocation7 + $0x348] sm:$0xff]
    %v486 = vld [vmem:[#allocation7 + $0x350] sm:$0xff]
    %v487 = vld [vmem:[#allocation7 + $0x358] sm:$0xff]
    %v488 = vld [vmem:[#allocation7 + $0x360] sm:$0xff]
    %v489 = vld [vmem:[#allocation7 + $0x368] sm:$0xff]
    %v490 = vld [vmem:[#allocation7 + $0x370] sm:$0xff]
    %v491 = vld [vmem:[#allocation7 + $0x378] sm:$0xff]
    %v492 = vld [vmem:[#allocation7 + $0x380] sm:$0xff]
    %v493 = vld [vmem:[#allocation7 + $0x388] sm:$0xff]
    %v494 = vld [vmem:[#allocation7 + $0x390] sm:$0xff]
    %v495 = vld [vmem:[#allocation7 + $0x398] sm:$0xff]
    %v496 = vld [vmem:[#allocation7 + $0x3a0] sm:$0xff]
    %v497 = vld [vmem:[#allocation7 + $0x3a8] sm:$0xff]
    %v498 = vld [vmem:[#allocation7 + $0x3b0] sm:$0xff]
    %v499 = vld [vmem:[#allocation7 + $0x3b8] sm:$0xff]
    %v500 = vld [vmem:[#allocation7 + $0x3c0] sm:$0xff]
    %v501 = vld [vmem:[#allocation7 + $0x3c8] sm:$0xff]
    %v502 = vld [vmem:[#allocation7 + $0x3d0] sm:$0xff]
    %v503 = vld [vmem:[#allocation7 + $0x3d8] sm:$0xff]
    %v504 = vld [vmem:[#allocation7 + $0x3e0] sm:$0xff]
    %v505 = vld [vmem:[#allocation7 + $0x3e8] sm:$0xff]
    %v506 = vld [vmem:[#allocation7 + $0x3f0] sm:$0xff]
    %v507 = vld [vmem:[#allocation7 + $0x3f8] sm:$0xff]
    %v508 = vld [vmem:[#allocation8] sm:$0xff]
    %v510 = vperm.slane %v508, 0
    %v511 = vperm.slane %v508, 1
    %v512 = vperm.slane %v508, 2
    %v513 = vperm.slane %v508, 3
    %v514 = vperm.slane %v508, 4
    %v515 = vperm.slane %v508, 5
    %v516 = vperm.slane %v508, 6
    %v517 = vperm.slane %v508, 7
    %526 = vmatpush.msra.mxu0 %v500
    %527 = vmatpush.msra.mxu0 %v492
    %528 = vmatpush.msra.mxu0 %v484
    %529 = vmatpush.msra.mxu0 %v476
    %530 = vmatpush.msra.mxu0 %v468
    %531 = vmatpush.msra.mxu0 %v460
    %532 = vmatpush.msra.mxu0 %v452
    %533 = vmatpush.msra.mxu0 %v444
    %534 = vmatpush.msra.mxu0 %v436
    %535 = vmatpush.msra.mxu0 %v428
    %536 = vmatpush.msra.mxu0 %v420
    %537 = vmatpush.msra.mxu0 %v412
    %538 = vmatpush.msra.mxu0 %v404
    %539 = vmatpush.msra.mxu0 %v396
    %540 = vmatpush.msra.mxu0 %v388
    %541 = vmatpush.msra.mxu0 %v380
    %542 = vmatmul.f32.gmra.mxu0 %v378
    %v543 = vpop.f32.mrf.mxu0
    %v544 = vadd.f32 %v510, %v543
    %545 = vdwg.mxu0
    %546 = vmatpush.msra.mxu0 %v501
    %547 = vmatpush.msra.mxu0 %v493
    %548 = vmatpush.msra.mxu0 %v485
    %549 = vmatpush.msra.mxu0 %v477
    %550 = vmatpush.msra.mxu0 %v469
    %551 = vmatpush.msra.mxu0 %v461
    %552 = vmatpush.msra.mxu0 %v453
    %553 = vmatpush.msra.mxu0 %v445
    %554 = vmatpush.msra.mxu0 %v437
    %555 = vmatpush.msra.mxu0 %v429
    %556 = vmatpush.msra.mxu0 %v421
    %557 = vmatpush.msra.mxu0 %v413
    %558 = vmatpush.msra.mxu0 %v405
    %559 = vmatpush.msra.mxu0 %v397
    %560 = vmatpush.msra.mxu0 %v389
    %561 = vmatpush.msra.mxu0 %v381
    %562 = vmatmul.f32.gmra.mxu0 %v378
    %v563 = vpop.f32.mrf.mxu0
    %v564 = vadd.f32 %v511, %v563
    %565 = vdwg.mxu0
    %566 = vmatpush.msra.mxu0 %v502
    %567 = vmatpush.msra.mxu0 %v494
    %568 = vmatpush.msra.mxu0 %v486
    %569 = vmatpush.msra.mxu0 %v478
    %570 = vmatpush.msra.mxu0 %v470
    %571 = vmatpush.msra.mxu0 %v462
    %572 = vmatpush.msra.mxu0 %v454
    %573 = vmatpush.msra.mxu0 %v446
    %574 = vmatpush.msra.mxu0 %v438
    %575 = vmatpush.msra.mxu0 %v430
    %576 = vmatpush.msra.mxu0 %v422
    %577 = vmatpush.msra.mxu0 %v414
    %578 = vmatpush.msra.mxu0 %v406
    %579 = vmatpush.msra.mxu0 %v398
    %580 = vmatpush.msra.mxu0 %v390
    %581 = vmatpush.msra.mxu0 %v382
    %582 = vmatmul.f32.gmra.mxu0 %v378
    %v583 = vpop.f32.mrf.mxu0
    %v584 = vadd.f32 %v512, %v583
    %585 = vdwg.mxu0
    %586 = vmatpush.msra.mxu0 %v503
    %587 = vmatpush.msra.mxu0 %v495
    %588 = vmatpush.msra.mxu0 %v487
    %589 = vmatpush.msra.mxu0 %v479
    %590 = vmatpush.msra.mxu0 %v471
    %591 = vmatpush.msra.mxu0 %v463
    %592 = vmatpush.msra.mxu0 %v455
    %593 = vmatpush.msra.mxu0 %v447
    %594 = vmatpush.msra.mxu0 %v439
    %595 = vmatpush.msra.mxu0 %v431
    %596 = vmatpush.msra.mxu0 %v423
    %597 = vmatpush.msra.mxu0 %v415
    %598 = vmatpush.msra.mxu0 %v407
    %599 = vmatpush.msra.mxu0 %v399
    %600 = vmatpush.msra.mxu0 %v391
    %601 = vmatpush.msra.mxu0 %v383
    %602 = vmatmul.f32.gmra.mxu0 %v378
    %v603 = vpop.f32.mrf.mxu0
    %v604 = vadd.f32 %v513, %v603
    %605 = vdwg.mxu0
    %606 = vmatpush.msra.mxu0 %v504
    %607 = vmatpush.msra.mxu0 %v496
    %608 = vmatpush.msra.mxu0 %v488
    %609 = vmatpush.msra.mxu0 %v480
    %610 = vmatpush.msra.mxu0 %v472
    %611 = vmatpush.msra.mxu0 %v464
    %612 = vmatpush.msra.mxu0 %v456
    %613 = vmatpush.msra.mxu0 %v448
    %614 = vmatpush.msra.mxu0 %v440
    %615 = vmatpush.msra.mxu0 %v432
    %616 = vmatpush.msra.mxu0 %v424
    %617 = vmatpush.msra.mxu0 %v416
    %618 = vmatpush.msra.mxu0 %v408
    %619 = vmatpush.msra.mxu0 %v400
    %620 = vmatpush.msra.mxu0 %v392
    %621 = vmatpush.msra.mxu0 %v384
    %622 = vmatmul.f32.gmra.mxu0 %v378
    %v623 = vpop.f32.mrf.mxu0
    %v624 = vadd.f32 %v514, %v623
    %625 = vdwg.mxu0
    %626 = vmatpush.msra.mxu0 %v505
    %627 = vmatpush.msra.mxu0 %v497
    %628 = vmatpush.msra.mxu0 %v489
    %629 = vmatpush.msra.mxu0 %v481
    %630 = vmatpush.msra.mxu0 %v473
    %631 = vmatpush.msra.mxu0 %v465
    %632 = vmatpush.msra.mxu0 %v457
    %633 = vmatpush.msra.mxu0 %v449
    %634 = vmatpush.msra.mxu0 %v441
    %635 = vmatpush.msra.mxu0 %v433
    %636 = vmatpush.msra.mxu0 %v425
    %637 = vmatpush.msra.mxu0 %v417
    %638 = vmatpush.msra.mxu0 %v409
    %639 = vmatpush.msra.mxu0 %v401
    %640 = vmatpush.msra.mxu0 %v393
    %641 = vmatpush.msra.mxu0 %v385
    %642 = vmatmul.f32.gmra.mxu0 %v378
    %v643 = vpop.f32.mrf.mxu0
    %v644 = vadd.f32 %v515, %v643
    %645 = vdwg.mxu0
    %646 = vmatpush.msra.mxu0 %v506
    %647 = vmatpush.msra.mxu0 %v498
    %648 = vmatpush.msra.mxu0 %v490
    %649 = vmatpush.msra.mxu0 %v482
    %650 = vmatpush.msra.mxu0 %v474
    %651 = vmatpush.msra.mxu0 %v466
    %652 = vmatpush.msra.mxu0 %v458
    %653 = vmatpush.msra.mxu0 %v450
    %654 = vmatpush.msra.mxu0 %v442
    %655 = vmatpush.msra.mxu0 %v434
    %656 = vmatpush.msra.mxu0 %v426
    %657 = vmatpush.msra.mxu0 %v418
    %658 = vmatpush.msra.mxu0 %v410
    %659 = vmatpush.msra.mxu0 %v402
    %660 = vmatpush.msra.mxu0 %v394
    %661 = vmatpush.msra.mxu0 %v386
    %662 = vmatmul.f32.gmra.mxu0 %v378
    %v663 = vpop.f32.mrf.mxu0
    %v664 = vadd.f32 %v516, %v663
    %665 = vdwg.mxu0
    %666 = vmatpush.msra.mxu0 %v507
    %667 = vmatpush.msra.mxu0 %v499
    %668 = vmatpush.msra.mxu0 %v491
    %669 = vmatpush.msra.mxu0 %v483
    %670 = vmatpush.msra.mxu0 %v475
    %671 = vmatpush.msra.mxu0 %v467
    %672 = vmatpush.msra.mxu0 %v459
    %673 = vmatpush.msra.mxu0 %v451
    %674 = vmatpush.msra.mxu0 %v443
    %675 = vmatpush.msra.mxu0 %v435
    %676 = vmatpush.msra.mxu0 %v427
    %677 = vmatpush.msra.mxu0 %v419
    %678 = vmatpush.msra.mxu0 %v411
    %679 = vmatpush.msra.mxu0 %v403
    %680 = vmatpush.msra.mxu0 %v395
    %681 = vmatpush.msra.mxu0 %v387
    %682 = vmatmul.f32.gmra.mxu0 %v378
    %v683 = vpop.f32.mrf.mxu0
    %v684 = vadd.f32 %v517, %v683
    %685 = vdwg.mxu0
    %686 = vst [vmem:[#allocation10] sm:$0xff] %v544
    %687 = vst [vmem:[#allocation10 + $0x8] sm:$0xff] %v564
    %688 = vst [vmem:[#allocation10 + $0x10] sm:$0xff] %v584
    %689 = vst [vmem:[#allocation10 + $0x18] sm:$0xff] %v604
    %690 = vst [vmem:[#allocation10 + $0x20] sm:$0xff] %v624
    %691 = vst [vmem:[#allocation10 + $0x28] sm:$0xff] %v644
    %692 = vst [vmem:[#allocation10 + $0x30] sm:$0xff] %v664
    %693 = vst [vmem:[#allocation10 + $0x38] sm:$0xff] %v684
    // Predicated region
    $region38: #{tpu_custom_call.1} parent=1 // pred_check
      _
    $region39: #{tpu_custom_call.1} parent=1 // pred_check_branch
      %695 = sbr.rel (0) target = $region41
    $region40: #{tpu_custom_call.1} parent=1 // pred_region
      %697 = vsyncadd [#allocation4], 0
      %s699 = sshll.u32 [#allocation10], 4
      %s700 = int_to_ptr.vmem [resolvable:$true] %s699
      %s701 = sshll.u32 %s5, 4
      %s702 = int_to_ptr.hbm [resolvable:$true] %s701
      %704 = dma.vmem_to_hbm [thread:$0]  %s700, 1024, %s702, [#allocation4]
    $region41: #{tpu_custom_call.1} parent=1 // pred_fallthru
      _
    // Predicated region
    $region42: #{tpu_custom_call.1} parent=1 // pred_check
      _
    $region43: #{tpu_custom_call.1} parent=1 // pred_check_branch
      %706 = sbr.rel (0) target = $region45
    $region44: #{tpu_custom_call.1} parent=1 // pred_region
      %708 = dma.done [#allocation4], 1024
    $region45: #{tpu_custom_call.1} parent=1 // pred_fallthru
      _
    %709 = vsyncpa [#allocation3], 1
    %710 = vsyncpa [#allocation6], 1
    %711 = vsyncpa [#allocation9], 1
    %712 = vsyncpa [#allocation4], 1

</llo_original>
